<compile_context>
chip_gen: v6e
topology: v6e:2x2x1
jax: 0.10.0
libtpu: 0.0.40
codegen_flags: <defaults>
</compile_context>

<pallas_src>
import functools
import math

import jax
import jax.numpy as jnp
from jax.experimental import pallas as pl
from jax.experimental.pallas import tpu as pltpu


def _round_up(x: int, m: int) -> int:
    return (x + m - 1) // m * m


@functools.lru_cache(maxsize=None)
def _tpu_hw():
    """Return (physical VMEM bytes per core, MXU tile width). Conservative fallback."""
    kind = ""
    try:
        kind = jax.devices()[0].device_kind.lower()
    except Exception:
        pass
    vmem = None
    try:
        vmem = int(pltpu.get_tpu_info().vmem_capacity_bytes)
    except Exception:
        vmem = None
    if vmem is None:
        if ("v5 lite" in kind or "v5e" in kind or "v5litepod" in kind
                or "v6" in kind):
            vmem = 128 * 1024 * 1024
        else:
            vmem = 64 * 1024 * 1024  # conservative (v7x and unknown parts)
    mxu = 256 if ("v6" in kind or "v7" in kind) else 128
    return vmem, mxu


def _two_layer_kernel(x_ref, w1_ref, b1_ref, w2_ref, b2_ref, o_ref):
    # fc1: (TB, I) @ (I, Hp) -> f32 MXU accumulator.
    h = jnp.dot(x_ref[...], w1_ref[...], preferred_element_type=jnp.float32)
    # Bias add (VPU) + tanh (EUP) in f32.
    # (If profiling ever shows EUP-bound on v6e/v7x, tanh could run in bf16.)
    h = jnp.tanh(h + b1_ref[...])
    # fc2: (TB, Hp) @ (Hp, O) -> f32 MXU accumulator. Cast is a no-op for f32.
    y = jnp.dot(h.astype(w2_ref.dtype), w2_ref[...],
                preferred_element_type=jnp.float32)
    o_ref[...] = (y + b2_ref[...]).astype(o_ref.dtype)


def prepare_two_layer_params(w1, b1, w2, b2, *, compute_dtype=None, mxu_dim=None):
    """Pad/cast weights ONCE (hoisted out of the per-forward hot path).

    w1: (I, H), b1: (H,), w2: (H, O), b2: (O,).
    Zero-padding of the hidden dim is numerically exact: padded b1 lanes give
    tanh(0)=0 and padded W2 rows are zero, so they contribute nothing.
    """
    I, H = w1.shape
    H2, O = w2.shape
    assert H2 == H and b1.shape == (H,) and b2.shape == (O,)
    if mxu_dim is None:
        _, mxu_dim = _tpu_hw()
    # 256-align the hidden dim on 256-wide MXUs only when the real size earns it.
    align = 256 if (mxu_dim >= 256 and H >= 256) else 128
    Hp = _round_up(H, align)

    w_dtype = compute_dtype if compute_dtype is not None else w1.dtype
    w1_p = jnp.pad(w1, ((0, 0), (0, Hp - H))).astype(w_dtype)
    w2_p = jnp.pad(w2, ((0, Hp - H), (0, 0))).astype(w_dtype)
    # Biases stay f32 on the accumulator path.
    b1_p = jnp.pad(b1, (0, Hp - H)).reshape(1, Hp).astype(jnp.float32)
    b2_p = jnp.reshape(b2, (1, O)).astype(jnp.float32)
    return {"w1": w1_p, "b1": b1_p, "w2": w2_p, "b2": b2_p,
            "compute_dtype": compute_dtype}


def _vmem_need_bytes(tb, I, Hp, O, in_bytes, w_bytes, out_bytes, weight_bufs):
    weights = weight_bufs * ((I * Hp + Hp * O) * w_bytes + (Hp + O) * 4)
    x_bufs = 2 * tb * I * in_bytes          # double-buffered x tile
    o_bufs = 2 * tb * O * out_bytes         # double-buffered out tile
    h_slab = tb * Hp * 4                    # f32 tanh intermediate
    if w_bytes < 4:
        h_slab += tb * Hp * w_bytes         # cast copy of h for the fc2 matmul
    return weights + x_bufs + o_bufs + h_slab


_SINGLE_BUFFER_OK = True  # flips to False if this jax rejects pl.Buffered(1)


def two_layer_lr_apply(x, params, *, block_b=None):
    """Apply the fused Linear -> Tanh -> Linear to x: (B, I) -> (B, O)."""
    global _SINGLE_BUFFER_OK
    w1_p, b1_p, w2_p, b2_p = params["w1"], params["b1"], params["w2"], params["b2"]
    compute_dtype = params.get("compute_dtype")

    B, I = x.shape
    assert w1_p.shape[0] == I
    Hp = w1_p.shape[1]
    O = w2_p.shape[1]
    out_dtype = x.dtype
    if compute_dtype is not None and x.dtype != compute_dtype:
        x = x.astype(compute_dtype)

    in_bytes = jnp.dtype(x.dtype).itemsize
    w_bytes = jnp.dtype(w1_p.dtype).itemsize
    out_bytes = jnp.dtype(out_dtype).itemsize

    vmem_phys, _ = _tpu_hw()
    budget = int(0.70 * vmem_phys)  # headroom for compiler scratch / double-buffers

    # Batch tile: big on 128 MiB parts (v5e/v6e), smaller on 64 MiB (v7x);
    # shrink until weights + x/o tiles + the f32 tanh slab fit the budget.
    if block_b is None:
        block_b = 2048 if vmem_phys >= 128 * 1024 * 1024 else 512
    tb = max(8, min(block_b, _round_up(B, 8)))
    tb = _round_up(tb, 8)
    while tb > 8 and _vmem_need_bytes(tb, I, Hp, O, in_bytes, w_bytes,
                                      out_bytes, 2) > budget:
        tb = max(8, (tb // 2) // 8 * 8)
    if tb >= B:
        tb = B  # single batch tile: full-extent block, no padding or masking
    grid_b = pl.cdiv(B, tb)

    need = _vmem_need_bytes(tb, I, Hp, O, in_bytes, w_bytes, out_bytes, 2)
    vmem_limit = None
    if need > 16 * 1024 * 1024:  # exceeds the smallest default scoped limit
        vmem_limit = min(int(need * 1.5) + (4 << 20), int(0.85 * vmem_phys))

    cost = pl.CostEstimate(
        flops=2 * B * Hp * (I + O),
        transcendentals=B * Hp,
        bytes_accessed=(B * I * in_bytes + B * O * out_bytes
                        + (I * Hp + Hp * O) * w_bytes + (Hp + O) * 4),
    )

    def build(single_buffer_weights):
        def wspec(shape):
            if single_buffer_weights:
                return pl.BlockSpec(shape, lambda i: (0, 0),
                                    pipeline_mode=pl.Buffered(1))
            return pl.BlockSpec(shape, lambda i: (0, 0))

        cp_kwargs = dict(dimension_semantics=("parallel",))
        if vmem_limit is not None:
            cp_kwargs["vmem_limit_bytes"] = vmem_limit

        return pl.pallas_call(
            _two_layer_kernel,
            out_shape=jax.ShapeDtypeStruct((B, O), out_dtype),
            grid_spec=pltpu.PrefetchScalarGridSpec(
                num_scalar_prefetch=0,
                grid=(grid_b,),
                in_specs=[
                    # Streamed per batch tile.
                    pl.BlockSpec((tb, I), lambda i: (i, 0)),
                    # Weights / biases: constant block index -> VMEM-resident.
                    wspec((I, Hp)),
                    wspec((1, Hp)),
                    wspec((Hp, O)),
                    wspec((1, O)),
                ],
                out_specs=pl.BlockSpec((tb, O), lambda i: (i, 0)),
            ),
            compiler_params=pltpu.CompilerParams(**cp_kwargs),
            cost_estimate=cost,
        )

    if _SINGLE_BUFFER_OK:
        try:
            out = build(True)(x, w1_p, b1_p, w2_p, b2_p)
            return jax.block_until_ready(out)
        except Exception:
            _SINGLE_BUFFER_OK = False  # this jax rejects Buffered(1); fall back
    return build(False)(x, w1_p, b1_p, w2_p, b2_p)


def two_layer_lr(x, w1, b1, w2, b2, *, compute_dtype=None, block_b=None):
    """One-shot convenience wrapper (prepare + apply). Prefer preparing once."""
    params = prepare_two_layer_params(w1, b1, w2, b2, compute_dtype=compute_dtype)
    return two_layer_lr_apply(x, params, block_b=block_b)


def reference(x, w1, b1, w2, b2):
    return jnp.tanh(x @ w1 + b1) @ w2 + b2


if __name__ == "__main__":
    # Small shapes consistent with the module's forward.
    batch, input_size, hidden_size, output_size = 8, 32, 32, 8

    key = jax.random.PRNGKey(0)
    kx, kw1, kb1, kw2, kb2 = jax.random.split(key, 5)

    # Deterministic init mimicking nn.Linear's U(-1/sqrt(in), 1/sqrt(in)).
    lim1 = 1.0 / math.sqrt(input_size)
    lim2 = 1.0 / math.sqrt(hidden_size)

    x = jax.random.normal(kx, (batch, input_size), dtype=jnp.float32)
    w1 = jax.random.uniform(kw1, (input_size, hidden_size),
                            minval=-lim1, maxval=lim1, dtype=jnp.float32)
    b1 = jax.random.uniform(kb1, (hidden_size,),
                            minval=-lim1, maxval=lim1, dtype=jnp.float32)
    w2 = jax.random.uniform(kw2, (hidden_size, output_size),
                            minval=-lim2, maxval=lim2, dtype=jnp.float32)
    b2 = jax.random.uniform(kb2, (output_size,),
                            minval=-lim2, maxval=lim2, dtype=jnp.float32)

    # Weights padded / laid out once (hoisted out of the per-forward path).
    params = prepare_two_layer_params(w1, b1, w2, b2)
    y = two_layer_lr_apply(x, params)
    jax.block_until_ready(y)

    y_ref = reference(x, w1, b1, w2, b2)
    assert y.shape == (batch, output_size)
    assert jnp.allclose(y, y_ref, atol=1e-5, rtol=1e-5)

    # bf16 matmul-operand path (halves HBM traffic / weight VMEM on all
    # generations; f32 accumulation) — looser tolerance.
    params_bf16 = prepare_two_layer_params(w1, b1, w2, b2,
                                           compute_dtype=jnp.bfloat16)
    y_bf16 = two_layer_lr_apply(x, params_bf16)
    jax.block_until_ready(y_bf16)
    assert jnp.allclose(y_bf16, y_ref, atol=2e-2, rtol=2e-2)

    print("KERNEL_OK")
</pallas_src>

<mosaic_0001>
module attributes {stable_mosaic.version = 11 : i64} {
  func.func @_two_layer_kernel(%arg0: i32, %arg1: memref<8x32xf32, #tpu.memory_space<vmem>>, %arg2: memref<32x128xf32, #tpu.memory_space<vmem>>, %arg3: memref<1x128xf32, #tpu.memory_space<vmem>>, %arg4: memref<128x8xf32, #tpu.memory_space<vmem>>, %arg5: memref<1x8xf32, #tpu.memory_space<vmem>>, %arg6: memref<8x8xf32, #tpu.memory_space<vmem>>) attributes {dimension_semantics = [#tpu.dimension_semantics<parallel>], iteration_bounds = array<i64: 1>, scalar_prefetch = 0 : i64, scratch_operands = 0 : i64, tpu.core_type = #tpu.core_type<tc>, window_params = [{transform_indices = @transform_0, window_bounds = array<i64: 8, 32>}, {pipeline_mode = #tpu.pipeline_mode<synchronous>, transform_indices = @transform_1, window_bounds = array<i64: 32, 128>}, {pipeline_mode = #tpu.pipeline_mode<synchronous>, transform_indices = @transform_2, window_bounds = array<i64: 1, 128>}, {pipeline_mode = #tpu.pipeline_mode<synchronous>, transform_indices = @transform_3, window_bounds = array<i64: 128, 8>}, {pipeline_mode = #tpu.pipeline_mode<synchronous>, transform_indices = @transform_4, window_bounds = array<i64: 1, 8>}, {transform_indices = @transform_5, window_bounds = array<i64: 8, 8>}]} {
    %c0 = arith.constant 0 : index
    %c0_0 = arith.constant 0 : index
    %0 = vector.load %arg1[%c0, %c0_0] : memref<8x32xf32, #tpu.memory_space<vmem>>, vector<8x32xf32>
    %c0_1 = arith.constant 0 : index
    %c0_2 = arith.constant 0 : index
    %1 = vector.load %arg2[%c0_1, %c0_2] : memref<32x128xf32, #tpu.memory_space<vmem>>, vector<32x128xf32>
    %cst = arith.constant dense<0.000000e+00> : vector<8x128xf32>
    %2 = tpu.matmul %0, %1, %cst {dimension_numbers = #tpu.dot_dimension_numbers<[1], [0], [0], [1], [0, 0, 1, 1], [], []>} : vector<8x32xf32>, vector<32x128xf32>, vector<8x128xf32> -> vector<8x128xf32>
    %c0_3 = arith.constant 0 : index
    %c0_4 = arith.constant 0 : index
    %3 = vector.load %arg3[%c0_3, %c0_4] : memref<1x128xf32, #tpu.memory_space<vmem>>, vector<1x128xf32>
    %4 = vector.broadcast %3 : vector<1x128xf32> to vector<8x128xf32>
    %5 = arith.addf %2, %4 : vector<8x128xf32>
    %6 = math.tanh %5 : vector<8x128xf32>
    %c0_5 = arith.constant 0 : index
    %c0_6 = arith.constant 0 : index
    %7 = vector.load %arg4[%c0_5, %c0_6] : memref<128x8xf32, #tpu.memory_space<vmem>>, vector<128x8xf32>
    %cst_7 = arith.constant dense<0.000000e+00> : vector<8x8xf32>
    %8 = tpu.matmul %6, %7, %cst_7 {dimension_numbers = #tpu.dot_dimension_numbers<[1], [0], [0], [1], [0, 0, 1, 1], [], []>} : vector<8x128xf32>, vector<128x8xf32>, vector<8x8xf32> -> vector<8x8xf32>
    %c0_8 = arith.constant 0 : index
    %c0_9 = arith.constant 0 : index
    %9 = vector.load %arg5[%c0_8, %c0_9] : memref<1x8xf32, #tpu.memory_space<vmem>>, vector<1x8xf32>
    %10 = vector.broadcast %9 : vector<1x8xf32> to vector<8x8xf32>
    %11 = arith.addf %8, %10 : vector<8x8xf32>
    %c0_10 = arith.constant 0 : index
    %c0_11 = arith.constant 0 : index
    %12 = vector.load %arg6[%c0_10, %c0_11] : memref<8x8xf32, #tpu.memory_space<vmem>>, vector<8x8xf32>
    tpu.vector_store %arg6[%c0_10, %c0_11], %11 {strides = array<i32>} : memref<8x8xf32, #tpu.memory_space<vmem>>, vector<8x8xf32>,
    return
  }
  func.func @transform_0(%arg0: i32) -> (i32, i32) {
    %c0_i32 = arith.constant 0 : i32
    %c0_i32_0 = arith.constant 0 : i32
    return %arg0, %c0_i32 : i32, i32
  }
  func.func @transform_1(%arg0: i32) -> (i32, i32) {
    %c0_i32 = arith.constant 0 : i32
    %c0_i32_0 = arith.constant 0 : i32
    %c0_i32_1 = arith.constant 0 : i32
    return %c0_i32, %c0_i32_0 : i32, i32
  }
  func.func @transform_2(%arg0: i32) -> (i32, i32) {
    %c0_i32 = arith.constant 0 : i32
    %c0_i32_0 = arith.constant 0 : i32
    %c0_i32_1 = arith.constant 0 : i32
    return %c0_i32, %c0_i32_0 : i32, i32
  }
  func.func @transform_3(%arg0: i32) -> (i32, i32) {
    %c0_i32 = arith.constant 0 : i32
    %c0_i32_0 = arith.constant 0 : i32
    %c0_i32_1 = arith.constant 0 : i32
    return %c0_i32, %c0_i32_0 : i32, i32
  }
  func.func @transform_4(%arg0: i32) -> (i32, i32) {
    %c0_i32 = arith.constant 0 : i32
    %c0_i32_0 = arith.constant 0 : i32
    %c0_i32_1 = arith.constant 0 : i32
    return %c0_i32, %c0_i32_0 : i32, i32
  }
  func.func @transform_5(%arg0: i32) -> (i32, i32) {
    %c0_i32 = arith.constant 0 : i32
    %c0_i32_0 = arith.constant 0 : i32
    return %arg0, %c0_i32 : i32, i32
  }
}

module attributes {stable_mosaic.version = 11 : i64} {
  func.func @_two_layer_kernel(%arg0: i32, %arg1: memref<8x32xf32, #tpu.memory_space<vmem>>, %arg2: memref<32x128xf32, #tpu.memory_space<vmem>>, %arg3: memref<1x128xf32, #tpu.memory_space<vmem>>, %arg4: memref<128x8xf32, #tpu.memory_space<vmem>>, %arg5: memref<1x8xf32, #tpu.memory_space<vmem>>, %arg6: memref<8x8xf32, #tpu.memory_space<vmem>>) attributes {dimension_semantics = [#tpu.dimension_semantics<parallel>], iteration_bounds = array<i64: 1>, scalar_prefetch = 0 : i64, scratch_operands = 0 : i64, tpu.core_type = #tpu.core_type<tc>, window_params = [{transform_indices = @transform_0, window_bounds = array<i64: 8, 32>}, {pipeline_mode = #tpu.pipeline_mode<synchronous>, transform_indices = @transform_1, window_bounds = array<i64: 32, 128>}, {pipeline_mode = #tpu.pipeline_mode<synchronous>, transform_indices = @transform_2, window_bounds = array<i64: 1, 128>}, {pipeline_mode = #tpu.pipeline_mode<synchronous>, transform_indices = @transform_3, window_bounds = array<i64: 128, 8>}, {pipeline_mode = #tpu.pipeline_mode<synchronous>, transform_indices = @transform_4, window_bounds = array<i64: 1, 8>}, {transform_indices = @transform_5, window_bounds = array<i64: 8, 8>}]} {
    %c0 = arith.constant 0 : index
    %c0_0 = arith.constant 0 : index
    %0 = vector.load %arg1[%c0, %c0_0] : memref<8x32xf32, #tpu.memory_space<vmem>>, vector<8x32xf32>
    %c0_1 = arith.constant 0 : index
    %c0_2 = arith.constant 0 : index
    %1 = vector.load %arg2[%c0_1, %c0_2] : memref<32x128xf32, #tpu.memory_space<vmem>>, vector<32x128xf32>
    %cst = arith.constant dense<0.000000e+00> : vector<8x128xf32>
    %2 = tpu.matmul %0, %1, %cst {dimension_numbers = #tpu.dot_dimension_numbers<[1], [0], [0], [1], [0, 0, 1, 1], [], []>} : vector<8x32xf32>, vector<32x128xf32>, vector<8x128xf32> -> vector<8x128xf32>
    %c0_3 = arith.constant 0 : index
    %c0_4 = arith.constant 0 : index
    %3 = vector.load %arg3[%c0_3, %c0_4] : memref<1x128xf32, #tpu.memory_space<vmem>>, vector<1x128xf32>
    %4 = vector.broadcast %3 : vector<1x128xf32> to vector<8x128xf32>
    %5 = arith.addf %2, %4 : vector<8x128xf32>
    %6 = math.tanh %5 : vector<8x128xf32>
    %c0_5 = arith.constant 0 : index
    %c0_6 = arith.constant 0 : index
    %7 = vector.load %arg4[%c0_5, %c0_6] : memref<128x8xf32, #tpu.memory_space<vmem>>, vector<128x8xf32>
    %cst_7 = arith.constant dense<0.000000e+00> : vector<8x8xf32>
    %8 = tpu.matmul %6, %7, %cst_7 {dimension_numbers = #tpu.dot_dimension_numbers<[1], [0], [0], [1], [0, 0, 1, 1], [], []>} : vector<8x128xf32>, vector<128x8xf32>, vector<8x8xf32> -> vector<8x8xf32>
    %c0_8 = arith.constant 0 : index
    %c0_9 = arith.constant 0 : index
    %9 = vector.load %arg5[%c0_8, %c0_9] : memref<1x8xf32, #tpu.memory_space<vmem>>, vector<1x8xf32>
    %10 = vector.broadcast %9 : vector<1x8xf32> to vector<8x8xf32>
    %11 = arith.addf %8, %10 : vector<8x8xf32>
    %c0_10 = arith.constant 0 : index
    %c0_11 = arith.constant 0 : index
    %12 = vector.load %arg6[%c0_10, %c0_11] : memref<8x8xf32, #tpu.memory_space<vmem>>, vector<8x8xf32>
    tpu.vector_store %arg6[%c0_10, %c0_11], %11 {strides = array<i32>} : memref<8x8xf32, #tpu.memory_space<vmem>>, vector<8x8xf32>,
    return
  }
  func.func @transform_0(%arg0: i32) -> (i32, i32) {
    %c0_i32 = arith.constant 0 : i32
    %c0_i32_0 = arith.constant 0 : i32
    return %arg0, %c0_i32 : i32, i32
  }
  func.func @transform_1(%arg0: i32) -> (i32, i32) {
    %c0_i32 = arith.constant 0 : i32
    %c0_i32_0 = arith.constant 0 : i32
    %c0_i32_1 = arith.constant 0 : i32
    return %c0_i32, %c0_i32_0 : i32, i32
  }
  func.func @transform_2(%arg0: i32) -> (i32, i32) {
    %c0_i32 = arith.constant 0 : i32
    %c0_i32_0 = arith.constant 0 : i32
    %c0_i32_1 = arith.constant 0 : i32
    return %c0_i32, %c0_i32_0 : i32, i32
  }
  func.func @transform_3(%arg0: i32) -> (i32, i32) {
    %c0_i32 = arith.constant 0 : i32
    %c0_i32_0 = arith.constant 0 : i32
    %c0_i32_1 = arith.constant 0 : i32
    return %c0_i32, %c0_i32_0 : i32, i32
  }
  func.func @transform_4(%arg0: i32) -> (i32, i32) {
    %c0_i32 = arith.constant 0 : i32
    %c0_i32_0 = arith.constant 0 : i32
    %c0_i32_1 = arith.constant 0 : i32
    return %c0_i32, %c0_i32_0 : i32, i32
  }
  func.func @transform_5(%arg0: i32) -> (i32, i32) {
    %c0_i32 = arith.constant 0 : i32
    %c0_i32_0 = arith.constant 0 : i32
    return %arg0, %c0_i32 : i32, i32
  }
}

</mosaic_0001>

<llo_original>
// kernel: tpu_custom_call.1
$region0: #{tpu_custom_call.1}
  #allocation0 [shape = 'u32[]', space=smem, size = 0x4, offset = 0x4, fixed_abs, tag = 'smem constant byte address 0x4 - core index']
  #allocation1 [shape = 'u32[144,128]{1,0:T(1,128)}', space=vmem, size = 0x12000, scoped, tag = 'internal scratch']
  %s0 = inlined_call_operand.vmem [shape: f32[8,32], index: 0, kind: input, shape index: {}]
  %s1 = inlined_call_operand.vmem [shape: f32[32,128], index: 1, kind: input, shape index: {}]
  %s2 = inlined_call_operand.vmem [shape: f32[1,128], index: 2, kind: input, shape index: {}]
  %s3 = inlined_call_operand.vmem [shape: f32[128,8], index: 3, kind: input, shape index: {}]
  %s4 = inlined_call_operand.vmem [shape: f32[1,8], index: 4, kind: input, shape index: {}]
  %s5 = inlined_call_operand.hbm [shape: f32[8,8], index: 5, kind: output, shape index: {}]
  %s6 = sld [smem:[#allocation0]]
  $region30: #{tpu_custom_call.1} parent=0
    _
  %s8 = ssub.s32 1, %s6
  %s9 = scalar_select 0, %s8, %s6
  $region1: #{tpu_custom_call.1} parent=0
    #allocation2 [shape = 'u8[4096]{0}', space=vmem, size = 0x1000, scoped, tag = 'output window, operand 0, single buffered']
    #allocation3 [shape = 's32[1]{0}', space=sflag, size = 0x4, scoped, tag = 'scoped memory for tpu_custom_call.1']
    %10 = vsyncpa [#allocation3], 0
    // Predicated region
    $region2: #{tpu_custom_call.1} parent=1 // pred_check
      _
    $region3: #{tpu_custom_call.1} parent=1 // pred_check_branch
      %12 = sbr.rel (0) target = $region5
    $region4: #{tpu_custom_call.1} parent=1 // pred_region
      _
    $region5: #{tpu_custom_call.1} parent=1 // pred_fallthru
      _
    // Predicated region
    $region6: #{tpu_custom_call.1} parent=1 // pred_check
      _
    $region7: #{tpu_custom_call.1} parent=1 // pred_check_branch
      %14 = sbr.rel (0) target = $region9
    $region8: #{tpu_custom_call.1} parent=1 // pred_region
      _
    $region9: #{tpu_custom_call.1} parent=1 // pred_fallthru
      _
    // Predicated region
    $region10: #{tpu_custom_call.1} parent=1 // pred_check
      _
    $region11: #{tpu_custom_call.1} parent=1 // pred_check_branch
      %16 = sbr.rel (0) target = $region13
    $region12: #{tpu_custom_call.1} parent=1 // pred_region
      _
    $region13: #{tpu_custom_call.1} parent=1 // pred_fallthru
      _
    // Predicated region
    $region14: #{tpu_custom_call.1} parent=1 // pred_check
      _
    $region15: #{tpu_custom_call.1} parent=1 // pred_check_branch
      %18 = sbr.rel (0) target = $region17
    $region16: #{tpu_custom_call.1} parent=1 // pred_region
      _
    $region17: #{tpu_custom_call.1} parent=1 // pred_fallthru
      _
    // Predicated region
    $region18: #{tpu_custom_call.1} parent=1 // pred_check
      _
    $region19: #{tpu_custom_call.1} parent=1 // pred_check_branch
      %20 = sbr.rel (0) target = $region21
    $region20: #{tpu_custom_call.1} parent=1 // pred_region
      _
    $region21: #{tpu_custom_call.1} parent=1 // pred_fallthru
      _
    %v21 = vld [vmem:[%s0] sm:$0xff]
    %v22 = vld [vmem:[%s1] sm:$0xff]
    %v23 = vld [vmem:[%s1 + $0x8] sm:$0xff]
    %v24 = vld [vmem:[%s1 + $0x10] sm:$0xff]
    %v25 = vld [vmem:[%s1 + $0x18] sm:$0xff]
    %v26 = vld [vmem:[%s2] sm:$0x1]
    %v28 = vlaneseq
    %v29 = vshrl.u32 %v28, 7
    %v30 = vsub.s32 0, %v29
    %v31 = vrot.slane %v26, %v30
    %vm33 = vcmask 261120
    %v35 = vsel %vm33, %v21, 0
    %37 = vmatprep.subr.mxu0 0.0
    %38 = vmatpush1.msra.mxu0 0.0
    %39 = vmatprep.subr.mxu0 0.0
    %40 = vmatpush1.msra.mxu0 0.0
    %41 = vmatprep.subr.mxu0 0.0
    %42 = vmatpush1.msra.mxu0 0.0
    %43 = vmatprep.subr.mxu0 0.0
    %44 = vmatpush1.msra.mxu0 0.0
    %45 = vmatprep.subr.mxu0 0.0
    %46 = vmatpush1.msra.mxu0 0.0
    %47 = vmatprep.subr.mxu0 0.0
    %48 = vmatpush1.msra.mxu0 0.0
    %49 = vmatprep.subr.mxu0 0.0
    %50 = vmatpush1.msra.mxu0 0.0
    %51 = vmatprep.subr.mxu0 0.0
    %52 = vmatpush1.msra.mxu0 0.0
    %53 = vmatprep.subr.mxu0 0.0
    %54 = vmatpush1.msra.mxu0 0.0
    %55 = vmatprep.subr.mxu0 0.0
    %56 = vmatpush1.msra.mxu0 0.0
    %57 = vmatprep.subr.mxu0 0.0
    %58 = vmatpush1.msra.mxu0 0.0
    %59 = vmatprep.subr.mxu0 0.0
    %60 = vmatpush1.msra.mxu0 0.0
    %61 = vmatprep.subr.mxu0 0.0
    %62 = vmatpush1.msra.mxu0 %v25
    %63 = vmatprep.subr.mxu0 0.0
    %64 = vmatpush1.msra.mxu0 %v24
    %65 = vmatprep.subr.mxu0 0.0
    %66 = vmatpush1.msra.mxu0 %v23
    %67 = vmatprep.subr.mxu0 0.0
    %68 = vmatpush1.msra.mxu0 %v22
    %69 = vmatprep.subr.mxu0 0.0
    %70 = vmatpush2.msra.mxu0 0.0
    %71 = vmatprep.subr.mxu0 0.0
    %72 = vmatpush2.msra.mxu0 0.0
    %73 = vmatprep.subr.mxu0 0.0
    %74 = vmatpush2.msra.mxu0 0.0
    %75 = vmatprep.subr.mxu0 0.0
    %76 = vmatpush2.msra.mxu0 0.0
    %77 = vmatprep.subr.mxu0 0.0
    %78 = vmatpush2.msra.mxu0 0.0
    %79 = vmatprep.subr.mxu0 0.0
    %80 = vmatpush2.msra.mxu0 0.0
    %81 = vmatprep.subr.mxu0 0.0
    %82 = vmatpush2.msra.mxu0 0.0
    %83 = vmatprep.subr.mxu0 0.0
    %84 = vmatpush2.msra.mxu0 0.0
    %85 = vmatprep.subr.mxu0 0.0
    %86 = vmatpush2.msra.mxu0 0.0
    %87 = vmatprep.subr.mxu0 0.0
    %88 = vmatpush2.msra.mxu0 0.0
    %89 = vmatprep.subr.mxu0 0.0
    %90 = vmatpush2.msra.mxu0 0.0
    %91 = vmatprep.subr.mxu0 0.0
    %92 = vmatpush2.msra.mxu0 0.0
    %93 = vmatprep.subr.mxu0 0.0
    %94 = vmatpush2.msra.mxu0 0.0
    %95 = vmatprep.subr.mxu0 0.0
    %96 = vmatpush2.msra.mxu0 0.0
    %97 = vmatprep.subr.mxu0 0.0
    %98 = vmatpush2.msra.mxu0 0.0
    %99 = vmatprep.subr.mxu0 0.0
    %100 = vmatpush2.msra.mxu0 0.0
    %101 = vmatprep.mubr.f32.mxu0 0.0
    %102 = vmatmul.mubr.f32.gmra.mxu0 %v35
    %v103 = vpop.f32.mrf.mxu0
    %v104 = vadd.f32 %v31, %v103
    %v105 = vpop.f32.mrf.mxu0
    %106 = vdwg.mxu0
    %v107 = vtanh.pop %v104
    %v108 = vld [vmem:[%s3] sm:$0xff]
    %v109 = vld [vmem:[%s3 + $0x8] sm:$0xff]
    %v110 = vld [vmem:[%s3 + $0x10] sm:$0xff]
    %v111 = vld [vmem:[%s3 + $0x18] sm:$0xff]
    %v112 = vld [vmem:[%s3 + $0x20] sm:$0xff]
    %v113 = vld [vmem:[%s3 + $0x28] sm:$0xff]
    %v114 = vld [vmem:[%s3 + $0x30] sm:$0xff]
    %v115 = vld [vmem:[%s3 + $0x38] sm:$0xff]
    %v116 = vld [vmem:[%s3 + $0x40] sm:$0xff]
    %v117 = vld [vmem:[%s3 + $0x48] sm:$0xff]
    %v118 = vld [vmem:[%s3 + $0x50] sm:$0xff]
    %v119 = vld [vmem:[%s3 + $0x58] sm:$0xff]
    %v120 = vld [vmem:[%s3 + $0x60] sm:$0xff]
    %v121 = vld [vmem:[%s3 + $0x68] sm:$0xff]
    %v122 = vld [vmem:[%s3 + $0x70] sm:$0xff]
    %v123 = vld [vmem:[%s3 + $0x78] sm:$0xff]
    %v124 = vld [vmem:[%s4] sm:$0x1]
    %v126 = vlaneseq
    %v127 = vshrl.u32 %v126, 7
    %v128 = vsub.s32 0, %v127
    %v129 = vrot.slane %v124, %v128
    %131 = vmatprep.subr.mxu0 0.0
    %132 = vmatpush1.msra.mxu0 %v123
    %133 = vmatprep.subr.mxu0 0.0
    %134 = vmatpush1.msra.mxu0 %v122
    %135 = vmatprep.subr.mxu0 0.0
    %136 = vmatpush1.msra.mxu0 %v121
    %137 = vmatprep.subr.mxu0 0.0
    %138 = vmatpush1.msra.mxu0 %v120
    %139 = vmatprep.subr.mxu0 0.0
    %140 = vmatpush1.msra.mxu0 %v119
    %141 = vmatprep.subr.mxu0 0.0
    %142 = vmatpush1.msra.mxu0 %v118
    %143 = vmatprep.subr.mxu0 0.0
    %144 = vmatpush1.msra.mxu0 %v117
    %145 = vmatprep.subr.mxu0 0.0
    %146 = vmatpush1.msra.mxu0 %v116
    %147 = vmatprep.subr.mxu0 0.0
    %148 = vmatpush1.msra.mxu0 %v115
    %149 = vmatprep.subr.mxu0 0.0
    %150 = vmatpush1.msra.mxu0 %v114
    %151 = vmatprep.subr.mxu0 0.0
    %152 = vmatpush1.msra.mxu0 %v113
    %153 = vmatprep.subr.mxu0 0.0
    %154 = vmatpush1.msra.mxu0 %v112
    %155 = vmatprep.subr.mxu0 0.0
    %156 = vmatpush1.msra.mxu0 %v111
    %157 = vmatprep.subr.mxu0 0.0
    %158 = vmatpush1.msra.mxu0 %v110
    %159 = vmatprep.subr.mxu0 0.0
    %160 = vmatpush1.msra.mxu0 %v109
    %161 = vmatprep.subr.mxu0 0.0
    %162 = vmatpush1.msra.mxu0 %v108
    %163 = vmatprep.subr.mxu0 0.0
    %164 = vmatpush2.msra.mxu0 0.0
    %165 = vmatprep.subr.mxu0 0.0
    %166 = vmatpush2.msra.mxu0 0.0
    %167 = vmatprep.subr.mxu0 0.0
    %168 = vmatpush2.msra.mxu0 0.0
    %169 = vmatprep.subr.mxu0 0.0
    %170 = vmatpush2.msra.mxu0 0.0
    %171 = vmatprep.subr.mxu0 0.0
    %172 = vmatpush2.msra.mxu0 0.0
    %173 = vmatprep.subr.mxu0 0.0
    %174 = vmatpush2.msra.mxu0 0.0
    %175 = vmatprep.subr.mxu0 0.0
    %176 = vmatpush2.msra.mxu0 0.0
    %177 = vmatprep.subr.mxu0 0.0
    %178 = vmatpush2.msra.mxu0 0.0
    %179 = vmatprep.subr.mxu0 0.0
    %180 = vmatpush2.msra.mxu0 0.0
    %181 = vmatprep.subr.mxu0 0.0
    %182 = vmatpush2.msra.mxu0 0.0
    %183 = vmatprep.subr.mxu0 0.0
    %184 = vmatpush2.msra.mxu0 0.0
    %185 = vmatprep.subr.mxu0 0.0
    %186 = vmatpush2.msra.mxu0 0.0
    %187 = vmatprep.subr.mxu0 0.0
    %188 = vmatpush2.msra.mxu0 0.0
    %189 = vmatprep.subr.mxu0 0.0
    %190 = vmatpush2.msra.mxu0 0.0
    %191 = vmatprep.subr.mxu0 0.0
    %192 = vmatpush2.msra.mxu0 0.0
    %193 = vmatprep.subr.mxu0 0.0
    %194 = vmatpush2.msra.mxu0 0.0
    %195 = vmatprep.mubr.f32.mxu0 0.0
    %196 = vmatmul.mubr.f32.gmra.mxu0 %v107
    %v197 = vpop.f32.mrf.mxu0
    %v198 = vadd.f32 %v129, %v197
    %v199 = vpop.f32.mrf.mxu0
    %200 = vdwg.mxu0
    %vm201 = vcmask 64512
    %202 = vst.msk [vmem:[#allocation2] sm:$0xff] %vm201, %v198
    // Predicated region
    $region22: #{tpu_custom_call.1} parent=1 // pred_check
      _
    $region23: #{tpu_custom_call.1} parent=1 // pred_check_branch
      %204 = sbr.rel (0) target = $region25
    $region24: #{tpu_custom_call.1} parent=1 // pred_region
      %s206 = ssub.s32 128, 128
      %207 = vsyncadd [#allocation3], %s206
      %s209 = sshll.u32 [#allocation2], 4
      %s210 = int_to_ptr.vmem [resolvable:$true] %s209
      %212 = dma.vmem_to_hbm [thread:$0]  %s210, 128, %s5, [#allocation3]
    $region25: #{tpu_custom_call.1} parent=1 // pred_fallthru
      _
    // Predicated region
    $region26: #{tpu_custom_call.1} parent=1 // pred_check
      _
    $region27: #{tpu_custom_call.1} parent=1 // pred_check_branch
      %214 = sbr.rel (0) target = $region29
    $region28: #{tpu_custom_call.1} parent=1 // pred_region
      %215 = dma.done [#allocation3], 128
    $region29: #{tpu_custom_call.1} parent=1 // pred_fallthru
      _
    %216 = vsyncpa [#allocation3], 1

// kernel: tpu_custom_call.1
$region0: #{tpu_custom_call.1}
  #allocation0 [shape = 'u32[]', space=smem, size = 0x4, offset = 0x4, fixed_abs, tag = 'smem constant byte address 0x4 - core index']
  #allocation1 [shape = 'u32[144,128]{1,0:T(1,128)}', space=vmem, size = 0x12000, scoped, tag = 'internal scratch']
  %s0 = inlined_call_operand.vmem [shape: f32[8,32], index: 0, kind: input, shape index: {}]
  %s1 = inlined_call_operand.vmem [shape: f32[32,128], index: 1, kind: input, shape index: {}]
  %s2 = inlined_call_operand.vmem [shape: f32[1,128], index: 2, kind: input, shape index: {}]
  %s3 = inlined_call_operand.vmem [shape: f32[128,8], index: 3, kind: input, shape index: {}]
  %s4 = inlined_call_operand.vmem [shape: f32[1,8], index: 4, kind: input, shape index: {}]
  %s5 = inlined_call_operand.hbm [shape: f32[8,8], index: 5, kind: output, shape index: {}]
  %s6 = sld [smem:[#allocation0]]
  $region30: #{tpu_custom_call.1} parent=0
    _
  %s8 = ssub.s32 1, %s6
  %s9 = scalar_select 0, %s8, %s6
  $region1: #{tpu_custom_call.1} parent=0
    #allocation2 [shape = 'u8[4096]{0}', space=vmem, size = 0x1000, scoped, tag = 'output window, operand 0, single buffered']
    #allocation3 [shape = 's32[1]{0}', space=sflag, size = 0x4, scoped, tag = 'scoped memory for tpu_custom_call.1']
    %10 = vsyncpa [#allocation3], 0
    // Predicated region
    $region2: #{tpu_custom_call.1} parent=1 // pred_check
      _
    $region3: #{tpu_custom_call.1} parent=1 // pred_check_branch
      %12 = sbr.rel (0) target = $region5
    $region4: #{tpu_custom_call.1} parent=1 // pred_region
      _
    $region5: #{tpu_custom_call.1} parent=1 // pred_fallthru
      _
    // Predicated region
    $region6: #{tpu_custom_call.1} parent=1 // pred_check
      _
    $region7: #{tpu_custom_call.1} parent=1 // pred_check_branch
      %14 = sbr.rel (0) target = $region9
    $region8: #{tpu_custom_call.1} parent=1 // pred_region
      _
    $region9: #{tpu_custom_call.1} parent=1 // pred_fallthru
      _
    // Predicated region
    $region10: #{tpu_custom_call.1} parent=1 // pred_check
      _
    $region11: #{tpu_custom_call.1} parent=1 // pred_check_branch
      %16 = sbr.rel (0) target = $region13
    $region12: #{tpu_custom_call.1} parent=1 // pred_region
      _
    $region13: #{tpu_custom_call.1} parent=1 // pred_fallthru
      _
    // Predicated region
    $region14: #{tpu_custom_call.1} parent=1 // pred_check
      _
    $region15: #{tpu_custom_call.1} parent=1 // pred_check_branch
      %18 = sbr.rel (0) target = $region17
    $region16: #{tpu_custom_call.1} parent=1 // pred_region
      _
    $region17: #{tpu_custom_call.1} parent=1 // pred_fallthru
      _
    // Predicated region
    $region18: #{tpu_custom_call.1} parent=1 // pred_check
      _
    $region19: #{tpu_custom_call.1} parent=1 // pred_check_branch
      %20 = sbr.rel (0) target = $region21
    $region20: #{tpu_custom_call.1} parent=1 // pred_region
      _
    $region21: #{tpu_custom_call.1} parent=1 // pred_fallthru
      _
    %v21 = vld [vmem:[%s0] sm:$0xff]
    %v22 = vld [vmem:[%s1] sm:$0xff]
    %v23 = vld [vmem:[%s1 + $0x8] sm:$0xff]
    %v24 = vld [vmem:[%s1 + $0x10] sm:$0xff]
    %v25 = vld [vmem:[%s1 + $0x18] sm:$0xff]
    %v26 = vld [vmem:[%s2] sm:$0x1]
    %v28 = vlaneseq
    %v29 = vshrl.u32 %v28, 7
    %v30 = vsub.s32 0, %v29
    %v31 = vrot.slane %v26, %v30
    %vm33 = vcmask 261120
    %v35 = vsel %vm33, %v21, 0
    %37 = vmatprep.subr.mxu0 0.0
    %38 = vmatpush1.msra.mxu0 0.0
    %39 = vmatprep.subr.mxu0 0.0
    %40 = vmatpush1.msra.mxu0 0.0
    %41 = vmatprep.subr.mxu0 0.0
    %42 = vmatpush1.msra.mxu0 0.0
    %43 = vmatprep.subr.mxu0 0.0
    %44 = vmatpush1.msra.mxu0 0.0
    %45 = vmatprep.subr.mxu0 0.0
    %46 = vmatpush1.msra.mxu0 0.0
    %47 = vmatprep.subr.mxu0 0.0
    %48 = vmatpush1.msra.mxu0 0.0
    %49 = vmatprep.subr.mxu0 0.0
    %50 = vmatpush1.msra.mxu0 0.0
    %51 = vmatprep.subr.mxu0 0.0
    %52 = vmatpush1.msra.mxu0 0.0
    %53 = vmatprep.subr.mxu0 0.0
    %54 = vmatpush1.msra.mxu0 0.0
    %55 = vmatprep.subr.mxu0 0.0
    %56 = vmatpush1.msra.mxu0 0.0
    %57 = vmatprep.subr.mxu0 0.0
    %58 = vmatpush1.msra.mxu0 0.0
    %59 = vmatprep.subr.mxu0 0.0
    %60 = vmatpush1.msra.mxu0 0.0
    %61 = vmatprep.subr.mxu0 0.0
    %62 = vmatpush1.msra.mxu0 %v25
    %63 = vmatprep.subr.mxu0 0.0
    %64 = vmatpush1.msra.mxu0 %v24
    %65 = vmatprep.subr.mxu0 0.0
    %66 = vmatpush1.msra.mxu0 %v23
    %67 = vmatprep.subr.mxu0 0.0
    %68 = vmatpush1.msra.mxu0 %v22
    %69 = vmatprep.subr.mxu0 0.0
    %70 = vmatpush2.msra.mxu0 0.0
    %71 = vmatprep.subr.mxu0 0.0
    %72 = vmatpush2.msra.mxu0 0.0
    %73 = vmatprep.subr.mxu0 0.0
    %74 = vmatpush2.msra.mxu0 0.0
    %75 = vmatprep.subr.mxu0 0.0
    %76 = vmatpush2.msra.mxu0 0.0
    %77 = vmatprep.subr.mxu0 0.0
    %78 = vmatpush2.msra.mxu0 0.0
    %79 = vmatprep.subr.mxu0 0.0
    %80 = vmatpush2.msra.mxu0 0.0
    %81 = vmatprep.subr.mxu0 0.0
    %82 = vmatpush2.msra.mxu0 0.0
    %83 = vmatprep.subr.mxu0 0.0
    %84 = vmatpush2.msra.mxu0 0.0
    %85 = vmatprep.subr.mxu0 0.0
    %86 = vmatpush2.msra.mxu0 0.0
    %87 = vmatprep.subr.mxu0 0.0
    %88 = vmatpush2.msra.mxu0 0.0
    %89 = vmatprep.subr.mxu0 0.0
    %90 = vmatpush2.msra.mxu0 0.0
    %91 = vmatprep.subr.mxu0 0.0
    %92 = vmatpush2.msra.mxu0 0.0
    %93 = vmatprep.subr.mxu0 0.0
    %94 = vmatpush2.msra.mxu0 0.0
    %95 = vmatprep.subr.mxu0 0.0
    %96 = vmatpush2.msra.mxu0 0.0
    %97 = vmatprep.subr.mxu0 0.0
    %98 = vmatpush2.msra.mxu0 0.0
    %99 = vmatprep.subr.mxu0 0.0
    %100 = vmatpush2.msra.mxu0 0.0
    %101 = vmatprep.mubr.f32.mxu0 0.0
    %102 = vmatmul.mubr.f32.gmra.mxu0 %v35
    %v103 = vpop.f32.mrf.mxu0
    %v104 = vadd.f32 %v31, %v103
    %v105 = vpop.f32.mrf.mxu0
    %106 = vdwg.mxu0
    %v107 = vtanh.pop %v104
    %v108 = vld [vmem:[%s3] sm:$0xff]
    %v109 = vld [vmem:[%s3 + $0x8] sm:$0xff]
    %v110 = vld [vmem:[%s3 + $0x10] sm:$0xff]
    %v111 = vld [vmem:[%s3 + $0x18] sm:$0xff]
    %v112 = vld [vmem:[%s3 + $0x20] sm:$0xff]
    %v113 = vld [vmem:[%s3 + $0x28] sm:$0xff]
    %v114 = vld [vmem:[%s3 + $0x30] sm:$0xff]
    %v115 = vld [vmem:[%s3 + $0x38] sm:$0xff]
    %v116 = vld [vmem:[%s3 + $0x40] sm:$0xff]
    %v117 = vld [vmem:[%s3 + $0x48] sm:$0xff]
    %v118 = vld [vmem:[%s3 + $0x50] sm:$0xff]
    %v119 = vld [vmem:[%s3 + $0x58] sm:$0xff]
    %v120 = vld [vmem:[%s3 + $0x60] sm:$0xff]
    %v121 = vld [vmem:[%s3 + $0x68] sm:$0xff]
    %v122 = vld [vmem:[%s3 + $0x70] sm:$0xff]
    %v123 = vld [vmem:[%s3 + $0x78] sm:$0xff]
    %v124 = vld [vmem:[%s4] sm:$0x1]
    %v126 = vlaneseq
    %v127 = vshrl.u32 %v126, 7
    %v128 = vsub.s32 0, %v127
    %v129 = vrot.slane %v124, %v128
    %131 = vmatprep.subr.mxu0 0.0
    %132 = vmatpush1.msra.mxu0 %v123
    %133 = vmatprep.subr.mxu0 0.0
    %134 = vmatpush1.msra.mxu0 %v122
    %135 = vmatprep.subr.mxu0 0.0
    %136 = vmatpush1.msra.mxu0 %v121
    %137 = vmatprep.subr.mxu0 0.0
    %138 = vmatpush1.msra.mxu0 %v120
    %139 = vmatprep.subr.mxu0 0.0
    %140 = vmatpush1.msra.mxu0 %v119
    %141 = vmatprep.subr.mxu0 0.0
    %142 = vmatpush1.msra.mxu0 %v118
    %143 = vmatprep.subr.mxu0 0.0
    %144 = vmatpush1.msra.mxu0 %v117
    %145 = vmatprep.subr.mxu0 0.0
    %146 = vmatpush1.msra.mxu0 %v116
    %147 = vmatprep.subr.mxu0 0.0
    %148 = vmatpush1.msra.mxu0 %v115
    %149 = vmatprep.subr.mxu0 0.0
    %150 = vmatpush1.msra.mxu0 %v114
    %151 = vmatprep.subr.mxu0 0.0
    %152 = vmatpush1.msra.mxu0 %v113
    %153 = vmatprep.subr.mxu0 0.0
    %154 = vmatpush1.msra.mxu0 %v112
    %155 = vmatprep.subr.mxu0 0.0
    %156 = vmatpush1.msra.mxu0 %v111
    %157 = vmatprep.subr.mxu0 0.0
    %158 = vmatpush1.msra.mxu0 %v110
    %159 = vmatprep.subr.mxu0 0.0
    %160 = vmatpush1.msra.mxu0 %v109
    %161 = vmatprep.subr.mxu0 0.0
    %162 = vmatpush1.msra.mxu0 %v108
    %163 = vmatprep.subr.mxu0 0.0
    %164 = vmatpush2.msra.mxu0 0.0
    %165 = vmatprep.subr.mxu0 0.0
    %166 = vmatpush2.msra.mxu0 0.0
    %167 = vmatprep.subr.mxu0 0.0
    %168 = vmatpush2.msra.mxu0 0.0
    %169 = vmatprep.subr.mxu0 0.0
    %170 = vmatpush2.msra.mxu0 0.0
    %171 = vmatprep.subr.mxu0 0.0
    %172 = vmatpush2.msra.mxu0 0.0
    %173 = vmatprep.subr.mxu0 0.0
    %174 = vmatpush2.msra.mxu0 0.0
    %175 = vmatprep.subr.mxu0 0.0
    %176 = vmatpush2.msra.mxu0 0.0
    %177 = vmatprep.subr.mxu0 0.0
    %178 = vmatpush2.msra.mxu0 0.0
    %179 = vmatprep.subr.mxu0 0.0
    %180 = vmatpush2.msra.mxu0 0.0
    %181 = vmatprep.subr.mxu0 0.0
    %182 = vmatpush2.msra.mxu0 0.0
    %183 = vmatprep.subr.mxu0 0.0
    %184 = vmatpush2.msra.mxu0 0.0
    %185 = vmatprep.subr.mxu0 0.0
    %186 = vmatpush2.msra.mxu0 0.0
    %187 = vmatprep.subr.mxu0 0.0
    %188 = vmatpush2.msra.mxu0 0.0
    %189 = vmatprep.subr.mxu0 0.0
    %190 = vmatpush2.msra.mxu0 0.0
    %191 = vmatprep.subr.mxu0 0.0
    %192 = vmatpush2.msra.mxu0 0.0
    %193 = vmatprep.subr.mxu0 0.0
    %194 = vmatpush2.msra.mxu0 0.0
    %195 = vmatprep.mubr.f32.mxu0 0.0
    %196 = vmatmul.mubr.f32.gmra.mxu0 %v107
    %v197 = vpop.f32.mrf.mxu0
    %v198 = vadd.f32 %v129, %v197
    %v199 = vpop.f32.mrf.mxu0
    %200 = vdwg.mxu0
    %vm201 = vcmask 64512
    %202 = vst.msk [vmem:[#allocation2] sm:$0xff] %vm201, %v198
    // Predicated region
    $region22: #{tpu_custom_call.1} parent=1 // pred_check
      _
    $region23: #{tpu_custom_call.1} parent=1 // pred_check_branch
      %204 = sbr.rel (0) target = $region25
    $region24: #{tpu_custom_call.1} parent=1 // pred_region
      %s206 = ssub.s32 128, 128
      %207 = vsyncadd [#allocation3], %s206
      %s209 = sshll.u32 [#allocation2], 4
      %s210 = int_to_ptr.vmem [resolvable:$true] %s209
      %212 = dma.vmem_to_hbm [thread:$0]  %s210, 128, %s5, [#allocation3]
    $region25: #{tpu_custom_call.1} parent=1 // pred_fallthru
      _
    // Predicated region
    $region26: #{tpu_custom_call.1} parent=1 // pred_check
      _
    $region27: #{tpu_custom_call.1} parent=1 // pred_check_branch
      %214 = sbr.rel (0) target = $region29
    $region28: #{tpu_custom_call.1} parent=1 // pred_region
      %215 = dma.done [#allocation3], 128
    $region29: #{tpu_custom_call.1} parent=1 // pred_fallthru
      _
    %216 = vsyncpa [#allocation3], 1

</llo_original>
